<compile_context>
chip_gen: v6e
topology: v6e:2x2x1
jax: 0.10.0
libtpu: 0.0.40
codegen_flags: <defaults>
</compile_context>

<pallas_src>
import functools

import jax
import jax.numpy as jnp
from jax.experimental import pallas as pl
from jax.experimental.pallas import tpu as pltpu

# settings from the reference module (individual=False => a single shared nn.Linear)
SETTINGS = {"decomposition": True, "individual": False, "kernel_len": 25}

_LANE = 128
_MAX_D_TILE = 1024   # full-D tile up to this, else 1024-wide (128-multiple) tiles
_MAX_M_TILE = 8192   # hard cap on the row tile for the flattened (D < 128) path
_MAX_BT = 8          # max batch elements per grid step (statically unrolled matmuls)


def _cdiv(a, b):
    return -(-a // b)


def _round_up(a, b):
    return _cdiv(a, b) * b


def _vmem_budget_bytes():
    """Generation-aware scoped-VMEM budget (~3/4 of physical, v7x-safe fallback)."""
    cap = None
    try:
        info = pltpu.get_tpu_info()
        for attr in ("vmem_capacity_bytes", "vmem_size_bytes", "vmem_bytes"):
            cap = getattr(info, attr, None)
            if cap:
                break
    except Exception:
        cap = None
    if not cap:
        cap = 64 * 1024 * 1024            # conservative: v7x physical VMEM per TC
    return int(min((int(cap) * 3) // 4, 96 * 1024 * 1024))


def _vmem_limit_bytes(need, budget):
    # actual double-buffered need + headroom, clamped to the per-generation budget
    return int(min(budget, max(need + (4 << 20), 16 << 20)))


def _channels_lane_kernel(x_ref, w_ref, b_ref, o_ref, *, bt, compute_dtype):
    # x_ref: [bt, S, td]   (bt batch elements, channel tile on the lane axis)
    # w_ref: [P, S]        (resident, native nn.Linear layout -> no wrapper .T)
    # b_ref: [P, 1]        (f32)
    # o_ref: [bt, P, td]
    w = w_ref[...]
    b = b_ref[...]
    for i in range(bt):  # bt <= 8, static unroll; each slice written directly
        xi = x_ref[i]
        if compute_dtype is not None and xi.dtype != compute_dtype:
            xi = xi.astype(compute_dtype)          # in-kernel cast (free VPU op)
        acc = jnp.dot(w, xi, preferred_element_type=jnp.float32)
        o_ref[i] = (acc + b).astype(o_ref.dtype)


def _rows_flat_kernel(x_ref, w_ref, b_ref, o_ref, *, compute_dtype):
    # x_ref: [tm, S]  (tile of M = B*dim rows)
    # w_ref: [S, P]   (resident)
    # b_ref: [1, P]   (f32)
    # o_ref: [tm, P]
    x = x_ref[...]
    if compute_dtype is not None and x.dtype != compute_dtype:
        x = x.astype(compute_dtype)                # in-kernel cast
    acc = jnp.dot(x, w_ref[...], preferred_element_type=jnp.float32)
    o_ref[...] = (acc + b_ref[...]).astype(o_ref.dtype)


def _pick_bt(B, S, td, P, in_itemsize, out_itemsize, w_itemsize, budget):
    """Batch-tile size for the channels-on-lanes path."""
    target_bytes = 4 << 20                               # aim ~4 MiB of x per step
    bt = max(1, min(B, _MAX_BT, target_bytes // max(1, S * td * in_itemsize)))
    if B >= 2:
        bt = max(1, min(bt, B // 2))                     # >=2 batch steps (v7x 2 TCs)

    def need(b):
        return (2 * P * S * w_itemsize + 2 * P * 4       # resident weight + bias
                + 2 * b * S * td * in_itemsize           # double-buffered x tile
                + 2 * b * P * td * out_itemsize)         # double-buffered out tile

    while bt > 1 and need(bt) > budget:
        bt -= 1
    while bt > 1 and B % bt != 0:                        # avoid ragged batch tiles
        bt -= 1
    return bt, need(bt)


def ltsf_linear_forward(x, weight, bias, *, compute_dtype=None):
    """Forward pass of the LTSF `Linear` model (individual=False).

    x:      [B, seq_len, dim]
    weight: [pred_len, seq_len]   (PyTorch nn.Linear layout)
    bias:   [pred_len]
    returns [B, pred_len, dim]

    compute_dtype: optional MXU compute dtype (e.g. jnp.bfloat16).  x is cast
    per-tile inside the kernel (no extra HBM pass); accumulation is always f32
    and the output keeps x's dtype.  Default None == exact f32 compute.
    """
    B, S, D = x.shape
    P = weight.shape[0]
    out_dtype = x.dtype

    if compute_dtype is not None:
        weight = weight.astype(compute_dtype)      # tiny + resident: wrapper cast OK
    bias_f32 = bias.astype(jnp.float32)

    in_itemsize = jnp.dtype(x.dtype).itemsize
    out_itemsize = jnp.dtype(out_dtype).itemsize
    w_itemsize = jnp.dtype(weight.dtype).itemsize
    budget = _vmem_budget_bytes()

    cost = pl.CostEstimate(
        flops=2 * B * D * S * P,
        transcendentals=0,
        bytes_accessed=in_itemsize * B * S * D + w_itemsize * P * S
        + 4 * P
        + out_itemsize * B * P * D,
    )

    if D >= _LANE:
        # Transpose-free path: contract over S with channels on the lane axis.
        td = D if D <= _MAX_D_TILE else _MAX_D_TILE
        nd = _cdiv(D, td)
        if B == 1 and nd == 1 and D >= 2 * _LANE:
            # single-step grid would leave one v7x TensorCore idle: split D
            td = _round_up(_cdiv(D, 2), _LANE)
            nd = _cdiv(D, td)
        bt, need = _pick_bt(B, S, td, P, in_itemsize, out_itemsize, w_itemsize, budget)
        nb = _cdiv(B, bt)
        kernel = functools.partial(
            _channels_lane_kernel, bt=bt, compute_dtype=compute_dtype)
        return pl.pallas_call(
            kernel,
            out_shape=jax.ShapeDtypeStruct((B, P, D), out_dtype),
            grid_spec=pltpu.PrefetchScalarGridSpec(
                num_scalar_prefetch=0,
                grid=(nb, nd),
                in_specs=[
                    pl.BlockSpec((bt, S, td), lambda b, d: (b, 0, d)),
                    pl.BlockSpec((P, S), lambda b, d: (0, 0)),
                    pl.BlockSpec((P, 1), lambda b, d: (0, 0)),
                ],
                out_specs=pl.BlockSpec((bt, P, td), lambda b, d: (b, 0, d)),
            ),
            compiler_params=pltpu.CompilerParams(
                dimension_semantics=("parallel", "parallel"),
                vmem_limit_bytes=_vmem_limit_bytes(need, budget),
            ),
            cost_estimate=cost,
        )(x, weight, bias_f32.reshape(P, 1))

    # Small channel count (D < 128): flatten rows and tile the M = B*D axis.
    M = B * D
    xt = jnp.transpose(x, (0, 2, 1)).reshape(M, S)   # tiny tensors here (D < 128)
    w_t = weight.T                                   # [S, P]
    b2 = bias_f32.reshape(1, P)

    fixed = 2 * S * P * w_itemsize + 2 * P * 4       # resident weight + bias
    per_row = 2 * (S * in_itemsize + P * out_itemsize)
    tm_cap = max(8, (budget - fixed) // max(1, per_row))
    tm = min(M, tm_cap, _MAX_M_TILE)
    if tm >= M:
        tm = M
        if M >= 256:                                 # >=2 steps for v7x's two TCs
            tm = _round_up(_cdiv(M, 2), 8)
    else:
        tm = max(8, (tm // 8) * 8)                   # (8,128) constraint on row tile
    nm = _cdiv(M, tm)
    need = fixed + 2 * tm * S * in_itemsize + 2 * tm * P * out_itemsize

    kernel = functools.partial(_rows_flat_kernel, compute_dtype=compute_dtype)
    out_flat = pl.pallas_call(
        kernel,
        out_shape=jax.ShapeDtypeStruct((M, P), out_dtype),
        grid_spec=pltpu.PrefetchScalarGridSpec(
            num_scalar_prefetch=0,
            grid=(nm,),
            in_specs=[
                pl.BlockSpec((tm, S), lambda i: (i, 0)),
                pl.BlockSpec((S, P), lambda i: (0, 0)),
                pl.BlockSpec((1, P), lambda i: (0, 0)),
            ],
            out_specs=pl.BlockSpec((tm, P), lambda i: (i, 0)),
        ),
        compiler_params=pltpu.CompilerParams(
            dimension_semantics=("parallel",),
            vmem_limit_bytes=_vmem_limit_bytes(need, budget),
        ),
        cost_estimate=cost,
    )(xt, w_t, b2)

    # [B*D, P] -> [B, D, P] -> [B, P, D]  (matches the final x.transpose(1, 2))
    return jnp.transpose(out_flat.reshape(B, D, P), (0, 2, 1))


if __name__ == "__main__":
    key = jax.random.PRNGKey(0)
    kx, kw, kb, kx2, kx3 = jax.random.split(key, 5)

    B, seq_len, pred_len, dim = 2, 8, 16, 4
    # Deterministic nn.Linear(seq_len, pred_len) init: U(-1/sqrt(in), 1/sqrt(in))
    bound = 1.0 / (seq_len ** 0.5)
    weight = jax.random.uniform(kw, (pred_len, seq_len), minval=-bound,
                                maxval=bound, dtype=jnp.float32)
    bias = jax.random.uniform(kb, (pred_len,), minval=-bound, maxval=bound,
                              dtype=jnp.float32)

    # --- Case 1: module-consistent small shapes (small D -> row-flat path) ---
    x = jax.random.normal(kx, (B, seq_len, dim), dtype=jnp.float32)
    out = jax.block_until_ready(ltsf_linear_forward(x, weight, bias))
    ref = jnp.einsum("bsd,ps->bpd", x, weight) + bias[None, :, None]
    assert out.shape == (B, pred_len, dim)
    assert jnp.allclose(out, ref, atol=1e-4, rtol=1e-4)

    # --- Case 2: D >= 128 -> batch-tiled channels-on-lanes path (bt=2, grid=(2,1)) ---
    B2, dim2 = 4, 256
    x2 = jax.random.normal(kx2, (B2, seq_len, dim2), dtype=jnp.float32)
    out2 = jax.block_until_ready(ltsf_linear_forward(x2, weight, bias))
    ref2 = jnp.einsum("bsd,ps->bpd", x2, weight) + bias[None, :, None]
    assert out2.shape == (B2, pred_len, dim2)
    assert jnp.allclose(out2, ref2, atol=1e-4, rtol=1e-4)

    # --- Case 3: same shapes with in-kernel bf16 MXU compute (f32 accumulation) ---
    out3 = jax.block_until_ready(
        ltsf_linear_forward(x2, weight, bias, compute_dtype=jnp.bfloat16))
    assert out3.shape == (B2, pred_len, dim2)
    assert jnp.allclose(out3, ref2, atol=5e-2, rtol=5e-2)

    # --- Case 4: very wide channel axis -> td=1024 tiling (grid=(2, 2)) ---
    B4, dim4 = 2, 2048
    x4 = jax.random.normal(kx3, (B4, seq_len, dim4), dtype=jnp.float32)
    out4 = jax.block_until_ready(ltsf_linear_forward(x4, weight, bias))
    ref4 = jnp.einsum("bsd,ps->bpd", x4, weight) + bias[None, :, None]
    assert out4.shape == (B4, pred_len, dim4)
    assert jnp.allclose(out4, ref4, atol=1e-4, rtol=1e-4)

    # TODO(synk): the settings['individual']=True branch (per-channel Linear) is not
    # implemented since the reference settings use individual=False.
    print("KERNEL_OK")
</pallas_src>

<mosaic_0001>
module attributes {stable_mosaic.version = 11 : i64} {
  func.func @_rows_flat_kernel(%arg0: i32, %arg1: memref<8x8xf32, #tpu.memory_space<vmem>>, %arg2: memref<8x16xf32, #tpu.memory_space<vmem>>, %arg3: memref<1x16xf32, #tpu.memory_space<vmem>>, %arg4: memref<8x16xf32, #tpu.memory_space<vmem>>) attributes {dimension_semantics = [#tpu.dimension_semantics<parallel>], iteration_bounds = array<i64: 1>, scalar_prefetch = 0 : i64, scratch_operands = 0 : i64, tpu.core_type = #tpu.core_type<tc>, window_params = [{transform_indices = @transform_0, window_bounds = array<i64: 8, 8>}, {pipeline_mode = #tpu.pipeline_mode<synchronous>, transform_indices = @transform_1, window_bounds = array<i64: 8, 16>}, {pipeline_mode = #tpu.pipeline_mode<synchronous>, transform_indices = @transform_2, window_bounds = array<i64: 1, 16>}, {transform_indices = @transform_3, window_bounds = array<i64: 8, 16>}]} {
    %c0 = arith.constant 0 : index
    %c0_0 = arith.constant 0 : index
    %0 = vector.load %arg1[%c0, %c0_0] : memref<8x8xf32, #tpu.memory_space<vmem>>, vector<8x8xf32>
    %c0_1 = arith.constant 0 : index
    %c0_2 = arith.constant 0 : index
    %1 = vector.load %arg2[%c0_1, %c0_2] : memref<8x16xf32, #tpu.memory_space<vmem>>, vector<8x16xf32>
    %cst = arith.constant dense<0.000000e+00> : vector<8x16xf32>
    %2 = tpu.matmul %0, %1, %cst {dimension_numbers = #tpu.dot_dimension_numbers<[1], [0], [0], [1], [0, 0, 1, 1], [], []>} : vector<8x8xf32>, vector<8x16xf32>, vector<8x16xf32> -> vector<8x16xf32>
    %c0_3 = arith.constant 0 : index
    %c0_4 = arith.constant 0 : index
    %3 = vector.load %arg3[%c0_3, %c0_4] : memref<1x16xf32, #tpu.memory_space<vmem>>, vector<1x16xf32>
    %4 = vector.broadcast %3 : vector<1x16xf32> to vector<8x16xf32>
    %5 = arith.addf %2, %4 : vector<8x16xf32>
    %c0_5 = arith.constant 0 : index
    %c0_6 = arith.constant 0 : index
    %6 = vector.load %arg4[%c0_5, %c0_6] : memref<8x16xf32, #tpu.memory_space<vmem>>, vector<8x16xf32>
    tpu.vector_store %arg4[%c0_5, %c0_6], %5 {strides = array<i32>} : memref<8x16xf32, #tpu.memory_space<vmem>>, vector<8x16xf32>,
    return
  }
  func.func @transform_0(%arg0: i32) -> (i32, i32) {
    %c0_i32 = arith.constant 0 : i32
    %c0_i32_0 = arith.constant 0 : i32
    return %arg0, %c0_i32 : i32, i32
  }
  func.func @transform_1(%arg0: i32) -> (i32, i32) {
    %c0_i32 = arith.constant 0 : i32
    %c0_i32_0 = arith.constant 0 : i32
    %c0_i32_1 = arith.constant 0 : i32
    return %c0_i32, %c0_i32_0 : i32, i32
  }
  func.func @transform_2(%arg0: i32) -> (i32, i32) {
    %c0_i32 = arith.constant 0 : i32
    %c0_i32_0 = arith.constant 0 : i32
    %c0_i32_1 = arith.constant 0 : i32
    return %c0_i32, %c0_i32_0 : i32, i32
  }
  func.func @transform_3(%arg0: i32) -> (i32, i32) {
    %c0_i32 = arith.constant 0 : i32
    %c0_i32_0 = arith.constant 0 : i32
    return %arg0, %c0_i32 : i32, i32
  }
}

</mosaic_0001>

<llo_original>
// kernel: tpu_custom_call.1
$region0: #{tpu_custom_call.1}
  #allocation0 [shape = 'u32[]', space=smem, size = 0x4, offset = 0x4, fixed_abs, tag = 'smem constant byte address 0x4 - core index']
  #allocation1 [shape = 'u32[144,128]{1,0:T(1,128)}', space=vmem, size = 0x12000, scoped, tag = 'internal scratch']
  %s0 = inlined_call_operand.hbm [shape: f32[8,8], index: 0, kind: input, shape index: {}]
  %s1 = inlined_call_operand.hbm [shape: f32[8,16], index: 1, kind: input, shape index: {}]
  %s2 = inlined_call_operand.vmem [shape: f32[1,16], index: 2, kind: input, shape index: {}]
  %s3 = inlined_call_operand.hbm [shape: f32[8,16], index: 3, kind: output, shape index: {}]
  %s4 = sld [smem:[#allocation0]]
  $region30: #{tpu_custom_call.1} parent=0
    _
  %s6 = ssub.s32 1, %s4
  %s7 = scalar_select 0, %s6, %s4
  $region1: #{tpu_custom_call.1} parent=0
    #allocation2 [shape = 'u8[4096]{0}', space=vmem, size = 0x1000, scoped, tag = 'input window, operand 0, single buffered']
    #allocation3 [shape = 's32[1]{0}', space=sflag, size = 0x4, scoped, tag = 'scoped memory for tpu_custom_call.1']
    #allocation4 [shape = 's32[1]{0}', space=sflag, size = 0x4, scoped, tag = 'scoped memory for tpu_custom_call.1']
    #allocation5 [shape = 'u8[4096]{0}', space=vmem, size = 0x1000, scoped, tag = 'input window, operand 1, single buffered']
    #allocation6 [shape = 's32[1]{0}', space=sflag, size = 0x4, scoped, tag = 'scoped memory for tpu_custom_call.1']
    #allocation7 [shape = 'u8[4096]{0}', space=vmem, size = 0x1000, scoped, tag = 'output window, operand 0, single buffered']
    %8 = vsyncpa [#allocation3], 0
    %9 = vsyncpa [#allocation6], 0
    %10 = vsyncpa [#allocation4], 0
    // Predicated region
    $region2: #{tpu_custom_call.1} parent=1 // pred_check
      _
    $region3: #{tpu_custom_call.1} parent=1 // pred_check_branch
      %12 = sbr.rel (0) target = $region5
    $region4: #{tpu_custom_call.1} parent=1 // pred_region
      %s14 = ssub.s32 128, 128
      %15 = vsyncadd [#allocation3], %s14
      %s17 = sshll.u32 [#allocation2], 4
      %s18 = int_to_ptr.vmem [resolvable:$true] %s17
      %20 = dma.hbm_to_vmem [thread:$0]  %s0, 128, %s18, [#allocation3]
    $region5: #{tpu_custom_call.1} parent=1 // pred_fallthru
      _
    // Predicated region
    $region6: #{tpu_custom_call.1} parent=1 // pred_check
      _
    $region7: #{tpu_custom_call.1} parent=1 // pred_check_branch
      %22 = sbr.rel (0) target = $region9
    $region8: #{tpu_custom_call.1} parent=1 // pred_region
      %s24 = ssub.s32 128, 128
      %25 = vsyncadd [#allocation6], %s24
      %s27 = sshll.u32 [#allocation5], 4
      %s28 = int_to_ptr.vmem [resolvable:$true] %s27
      %30 = dma.hbm_to_vmem [thread:$0]  %s1, 128, %s28, [#allocation6]
    $region9: #{tpu_custom_call.1} parent=1 // pred_fallthru
      _
    // Predicated region
    $region10: #{tpu_custom_call.1} parent=1 // pred_check
      _
    $region11: #{tpu_custom_call.1} parent=1 // pred_check_branch
      %32 = sbr.rel (0) target = $region13
    $region12: #{tpu_custom_call.1} parent=1 // pred_region
      _
    $region13: #{tpu_custom_call.1} parent=1 // pred_fallthru
      _
    // Predicated region
    $region14: #{tpu_custom_call.1} parent=1 // pred_check
      _
    $region15: #{tpu_custom_call.1} parent=1 // pred_check_branch
      %34 = sbr.rel (0) target = $region17
    $region16: #{tpu_custom_call.1} parent=1 // pred_region
      %35 = dma.done [#allocation3], 128
    $region17: #{tpu_custom_call.1} parent=1 // pred_fallthru
      _
    // Predicated region
    $region18: #{tpu_custom_call.1} parent=1 // pred_check
      _
    $region19: #{tpu_custom_call.1} parent=1 // pred_check_branch
      %37 = sbr.rel (0) target = $region21
    $region20: #{tpu_custom_call.1} parent=1 // pred_region
      %38 = dma.done [#allocation6], 128
    $region21: #{tpu_custom_call.1} parent=1 // pred_fallthru
      _
    %v39 = vld [vmem:[#allocation2] sm:$0xff]
    %v40 = vld [vmem:[#allocation5] sm:$0xff]
    %v41 = vld [vmem:[%s2] sm:$0x1]
    %v43 = vlaneseq
    %v44 = vshrl.u32 %v43, 7
    %v45 = vsub.s32 0, %v44
    %v46 = vrot.slane %v41, %v45
    %vm48 = vcmask 64512
    %v50 = vsel %vm48, %v39, 0
    %52 = vmatprep.subr.mxu0 0.0
    %53 = vmatpush1.msra.mxu0 0.0
    %54 = vmatprep.subr.mxu0 0.0
    %55 = vmatpush1.msra.mxu0 0.0
    %56 = vmatprep.subr.mxu0 0.0
    %57 = vmatpush1.msra.mxu0 0.0
    %58 = vmatprep.subr.mxu0 0.0
    %59 = vmatpush1.msra.mxu0 0.0
    %60 = vmatprep.subr.mxu0 0.0
    %61 = vmatpush1.msra.mxu0 0.0
    %62 = vmatprep.subr.mxu0 0.0
    %63 = vmatpush1.msra.mxu0 0.0
    %64 = vmatprep.subr.mxu0 0.0
    %65 = vmatpush1.msra.mxu0 0.0
    %66 = vmatprep.subr.mxu0 0.0
    %67 = vmatpush1.msra.mxu0 0.0
    %68 = vmatprep.subr.mxu0 0.0
    %69 = vmatpush1.msra.mxu0 0.0
    %70 = vmatprep.subr.mxu0 0.0
    %71 = vmatpush1.msra.mxu0 0.0
    %72 = vmatprep.subr.mxu0 0.0
    %73 = vmatpush1.msra.mxu0 0.0
    %74 = vmatprep.subr.mxu0 0.0
    %75 = vmatpush1.msra.mxu0 0.0
    %76 = vmatprep.subr.mxu0 0.0
    %77 = vmatpush1.msra.mxu0 0.0
    %78 = vmatprep.subr.mxu0 0.0
    %79 = vmatpush1.msra.mxu0 0.0
    %80 = vmatprep.subr.mxu0 0.0
    %81 = vmatpush1.msra.mxu0 0.0
    %82 = vmatprep.subr.mxu0 0.0
    %83 = vmatpush1.msra.mxu0 %v40
    %84 = vmatprep.subr.mxu0 0.0
    %85 = vmatpush2.msra.mxu0 0.0
    %86 = vmatprep.subr.mxu0 0.0
    %87 = vmatpush2.msra.mxu0 0.0
    %88 = vmatprep.subr.mxu0 0.0
    %89 = vmatpush2.msra.mxu0 0.0
    %90 = vmatprep.subr.mxu0 0.0
    %91 = vmatpush2.msra.mxu0 0.0
    %92 = vmatprep.subr.mxu0 0.0
    %93 = vmatpush2.msra.mxu0 0.0
    %94 = vmatprep.subr.mxu0 0.0
    %95 = vmatpush2.msra.mxu0 0.0
    %96 = vmatprep.subr.mxu0 0.0
    %97 = vmatpush2.msra.mxu0 0.0
    %98 = vmatprep.subr.mxu0 0.0
    %99 = vmatpush2.msra.mxu0 0.0
    %100 = vmatprep.subr.mxu0 0.0
    %101 = vmatpush2.msra.mxu0 0.0
    %102 = vmatprep.subr.mxu0 0.0
    %103 = vmatpush2.msra.mxu0 0.0
    %104 = vmatprep.subr.mxu0 0.0
    %105 = vmatpush2.msra.mxu0 0.0
    %106 = vmatprep.subr.mxu0 0.0
    %107 = vmatpush2.msra.mxu0 0.0
    %108 = vmatprep.subr.mxu0 0.0
    %109 = vmatpush2.msra.mxu0 0.0
    %110 = vmatprep.subr.mxu0 0.0
    %111 = vmatpush2.msra.mxu0 0.0
    %112 = vmatprep.subr.mxu0 0.0
    %113 = vmatpush2.msra.mxu0 0.0
    %114 = vmatprep.subr.mxu0 0.0
    %115 = vmatpush2.msra.mxu0 0.0
    %116 = vmatprep.mubr.f32.mxu0 0.0
    %117 = vmatmul.mubr.f32.gmra.mxu0 %v50
    %v118 = vpop.f32.mrf.mxu0
    %v119 = vadd.f32 %v46, %v118
    %v120 = vpop.f32.mrf.mxu0
    %121 = vdwg.mxu0
    %vm122 = vcmask 130048
    %123 = vst.msk [vmem:[#allocation7] sm:$0xff] %vm122, %v119
    // Predicated region
    $region22: #{tpu_custom_call.1} parent=1 // pred_check
      _
    $region23: #{tpu_custom_call.1} parent=1 // pred_check_branch
      %125 = sbr.rel (0) target = $region25
    $region24: #{tpu_custom_call.1} parent=1 // pred_region
      %s127 = ssub.s32 128, 128
      %128 = vsyncadd [#allocation4], %s127
      %s130 = sshll.u32 [#allocation7], 4
      %s131 = int_to_ptr.vmem [resolvable:$true] %s130
      %133 = dma.vmem_to_hbm [thread:$0]  %s131, 128, %s3, [#allocation4]
    $region25: #{tpu_custom_call.1} parent=1 // pred_fallthru
      _
    // Predicated region
    $region26: #{tpu_custom_call.1} parent=1 // pred_check
      _
    $region27: #{tpu_custom_call.1} parent=1 // pred_check_branch
      %135 = sbr.rel (0) target = $region29
    $region28: #{tpu_custom_call.1} parent=1 // pred_region
      %136 = dma.done [#allocation4], 128
    $region29: #{tpu_custom_call.1} parent=1 // pred_fallthru
      _
    %137 = vsyncpa [#allocation3], 1
    %138 = vsyncpa [#allocation6], 1
    %139 = vsyncpa [#allocation4], 1

</llo_original>
